<compile_context>
chip_gen: v5e
topology: v5e:2x2
jax: 0.10.0
libtpu: 0.0.40
codegen_flags: <defaults>
</compile_context>

<pallas_src>
import jax
import jax.numpy as jnp
from jax.experimental import pallas as pl
from jax.experimental.pallas import tpu as pltpu

EPS = 1e-5


def _adaptive_norm_kernel(w_ref, x_ref, gamma_ref, beta_ref, o_ref):
    # w_ref:     SMEM (2,)            -> [w0, w1]
    # x_ref:     VMEM (N, c_blk, HW)  -> one channel block, full reduction extent
    # gamma_ref: VMEM (c_blk, 1)
    # beta_ref:  VMEM (c_blk, 1)
    x = x_ref[...].astype(jnp.float32)                # (N, c_blk, HW)
    n, _, hw = x.shape
    inv_count = 1.0 / (n * hw)

    # Per-channel mean: partial reduce across N (VALU adds), one lane reduce (XLU).
    row_sum = jnp.sum(x, axis=0)                                   # (c_blk, HW)
    mean = jnp.sum(row_sum, axis=1, keepdims=True) * inv_count     # (c_blk, 1)

    # Per-channel biased variance, two-pass (centered) -> no cancellation risk.
    centered = x - mean[None]                                      # (N, c_blk, HW)
    sq_sum = jnp.sum(centered * centered, axis=0)                  # (c_blk, HW)
    var = jnp.sum(sq_sum, axis=1, keepdims=True) * inv_count       # (c_blk, 1)

    inv_std = jax.lax.rsqrt(var + EPS)                             # (c_blk, 1)

    # Fold BatchNorm affine + adaptive mix into a single per-channel scale/shift.
    w0 = w_ref[0]
    w1 = w_ref[1]
    g_is = gamma_ref[...] * inv_std                                # (c_blk, 1)
    a = w0 * g_is + w1                                             # (c_blk, 1)
    b = w0 * (beta_ref[...] - mean * g_is)                         # (c_blk, 1)

    o_ref[...] = (a[None] * x + b[None]).astype(o_ref.dtype)


def _pick_c_blk(N, C, HW, itemsize):
    """Largest channel block whose double-buffered working set stays well under
    the default scoped-VMEM limit on every TPU generation (v5e/v6e/v7x)."""
    budget = 12 << 20  # bytes; conservative vs. 16 MiB (v5e) default scoped VMEM
    # Per-channel bytes per grid step: 2x double-buffered input block +
    # 2x double-buffered output block + ~3 f32 temporaries inside the kernel.
    per_c = N * HW * (4 * itemsize + 3 * 4)
    max_c = max(1, budget // per_c)
    if max_c >= C:
        return C
    best = None
    cb = 8
    while cb <= max_c:
        if C % cb == 0:
            best = cb
        cb += 8
    if best is not None:
        return best
    if C % 8 == 0:
        return 8  # smallest legal tiled channel block (f32 sublane multiple)
    # TODO(synk): very large N*H*W with C not a multiple of 8 would need an
    # "arbitrary" lane-axis grid with scratch accumulators; fall back to full C.
    return C


def adaptive_norm2d(x, gamma, beta, w0, w1, *, c_blk=None):
    """x: (N, C, H, W).  gamma/beta: (C,).  w0/w1: scalars."""
    N, C, H, W = x.shape
    HW = H * W

    # NCHW -> (N, C, H*W): a pure reshape, no data movement / transpose.
    x3 = x.reshape(N, C, HW)
    gamma_c1 = gamma.reshape(C, 1).astype(jnp.float32)
    beta_c1 = beta.reshape(C, 1).astype(jnp.float32)
    w = jnp.stack([jnp.asarray(w0, jnp.float32).reshape(()),
                   jnp.asarray(w1, jnp.float32).reshape(())])       # (2,)

    if c_blk is None:
        c_blk = _pick_c_blk(N, C, HW, x.dtype.itemsize)
    assert c_blk == C or (c_blk % 8 == 0 and C % c_blk == 0), (c_blk, C)
    grid = (C // c_blk,)

    out3 = pl.pallas_call(
        _adaptive_norm_kernel,
        out_shape=jax.ShapeDtypeStruct((N, C, HW), x.dtype),
        grid=grid,
        in_specs=[
            pl.BlockSpec(memory_space=pltpu.SMEM),                       # [w0, w1]
            pl.BlockSpec((N, c_blk, HW), lambda c: (0, c, 0)),           # x block
            pl.BlockSpec((c_blk, 1), lambda c: (c, 0)),                  # gamma
            pl.BlockSpec((c_blk, 1), lambda c: (c, 0)),                  # beta
        ],
        out_specs=pl.BlockSpec((N, c_blk, HW), lambda c: (0, c, 0)),
        compiler_params=pltpu.CompilerParams(
            dimension_semantics=("parallel",),       # channels are independent
            vmem_limit_bytes=32 * 1024 * 1024,
        ),
    )(w, x3, gamma_c1, beta_c1)

    return out3.reshape(N, C, H, W)


def _reference(x, gamma, beta, w0, w1):
    # Pure-JAX reference of training-mode BatchNorm2d + adaptive mix.
    mean = jnp.mean(x, axis=(0, 2, 3), keepdims=True)
    var = jnp.mean((x - mean) ** 2, axis=(0, 2, 3), keepdims=True)
    bn = (x - mean) * jax.lax.rsqrt(var + EPS)
    bn = bn * gamma.reshape(1, -1, 1, 1) + beta.reshape(1, -1, 1, 1)
    return w0 * bn + w1 * x


if __name__ == "__main__":
    key = jax.random.PRNGKey(0)
    k1, k2, k3, k4 = jax.random.split(key, 4)

    # --- Test 1: non-trivial w0/gamma/beta so the BatchNorm branch is exercised.
    N, C, H, W = 2, 4, 16, 16
    x = jax.random.normal(k1, (N, C, H, W), dtype=jnp.float32)
    gamma = 1.0 + 0.1 * jax.random.normal(k2, (C,), dtype=jnp.float32)
    beta = 0.1 * jax.random.normal(k3, (C,), dtype=jnp.float32)
    w0 = jnp.asarray(0.7, jnp.float32)
    w1 = jnp.asarray(0.3, jnp.float32)

    out = jax.block_until_ready(adaptive_norm2d(x, gamma, beta, w0, w1))
    ref = _reference(x, gamma, beta, w0, w1)
    assert out.shape == (N, C, H, W)
    assert jnp.allclose(out, ref, atol=1e-4, rtol=1e-4)

    # --- Test 2: module-default init (w0=0, w1=1, gamma=1, beta=0) -> identity mix.
    out_id = jax.block_until_ready(
        adaptive_norm2d(x, jnp.ones((C,), jnp.float32), jnp.zeros((C,), jnp.float32),
                        jnp.zeros((), jnp.float32), jnp.ones((), jnp.float32)))
    assert jnp.allclose(out_id, x, atol=1e-5, rtol=1e-5)

    # --- Test 3: multi-block channel grid (C=16, c_blk=8) exercises the tiled path.
    N2, C2, H2, W2 = 2, 16, 8, 16
    x2 = jax.random.normal(k4, (N2, C2, H2, W2), dtype=jnp.float32)
    g2 = 1.0 + 0.05 * jax.random.normal(k2, (C2,), dtype=jnp.float32)
    b2 = 0.05 * jax.random.normal(k3, (C2,), dtype=jnp.float32)
    out2 = jax.block_until_ready(adaptive_norm2d(x2, g2, b2, w0, w1, c_blk=8))
    ref2 = _reference(x2, g2, b2, w0, w1)
    assert jnp.allclose(out2, ref2, atol=1e-4, rtol=1e-4)

    print("KERNEL_OK")
</pallas_src>

<mosaic_0001>
module attributes {stable_mosaic.version = 11 : i64} {
  func.func @_adaptive_norm_kernel(%arg0: i32, %arg1: memref<2xf32, #tpu.memory_space<smem>>, %arg2: memref<2x4x256xf32, #tpu.memory_space<vmem>>, %arg3: memref<4x1xf32, #tpu.memory_space<vmem>>, %arg4: memref<4x1xf32, #tpu.memory_space<vmem>>, %arg5: memref<2x4x256xf32, #tpu.memory_space<vmem>>) attributes {dimension_semantics = [#tpu.dimension_semantics<parallel>], iteration_bounds = array<i64: 1>, scalar_prefetch = 0 : i64, scratch_operands = 0 : i64, tpu.core_type = #tpu.core_type<tc>, window_params = [{transform_indices = @transform_0, window_bounds = array<i64: 2>}, {transform_indices = @transform_1, window_bounds = array<i64: 2, 4, 256>}, {transform_indices = @transform_2, window_bounds = array<i64: 4, 1>}, {transform_indices = @transform_3, window_bounds = array<i64: 4, 1>}, {transform_indices = @transform_4, window_bounds = array<i64: 2, 4, 256>}]} {
    %c0 = arith.constant 0 : index
    %c0_0 = arith.constant 0 : index
    %c0_1 = arith.constant 0 : index
    %0 = vector.load %arg2[%c0, %c0_0, %c0_1] : memref<2x4x256xf32, #tpu.memory_space<vmem>>, vector<2x4x256xf32>
    %cst = arith.constant dense<0.000000e+00> : vector<4x256xf32>
    %1 = vector.multi_reduction <add>, %0, %cst [0] : vector<2x4x256xf32> to vector<4x256xf32>
    %cst_2 = arith.constant dense<0.000000e+00> : vector<4xf32>
    %2 = vector.multi_reduction <add>, %1, %cst_2 [1] : vector<4x256xf32> to vector<4xf32>
    %3 = vector.shape_cast %2 : vector<4xf32> to vector<4x1xf32>
    %cst_3 = arith.constant 0.001953125 : f32
    %4 = vector.broadcast %cst_3 : f32 to vector<4x1xf32>
    %5 = arith.mulf %3, %4 : vector<4x1xf32>
    %6 = vector.shape_cast %5 : vector<4x1xf32> to vector<1x4x1xf32>
    %7 = vector.broadcast %6 : vector<1x4x1xf32> to vector<2x4x256xf32>
    %8 = arith.subf %0, %7 : vector<2x4x256xf32>
    %9 = arith.mulf %8, %8 : vector<2x4x256xf32>
    %cst_4 = arith.constant dense<0.000000e+00> : vector<4x256xf32>
    %10 = vector.multi_reduction <add>, %9, %cst_4 [0] : vector<2x4x256xf32> to vector<4x256xf32>
    %cst_5 = arith.constant dense<0.000000e+00> : vector<4xf32>
    %11 = vector.multi_reduction <add>, %10, %cst_5 [1] : vector<4x256xf32> to vector<4xf32>
    %12 = vector.shape_cast %11 : vector<4xf32> to vector<4x1xf32>
    %cst_6 = arith.constant 0.001953125 : f32
    %13 = vector.broadcast %cst_6 : f32 to vector<4x1xf32>
    %14 = arith.mulf %12, %13 : vector<4x1xf32>
    %cst_7 = arith.constant 9.99999974E-6 : f32
    %15 = vector.broadcast %cst_7 : f32 to vector<4x1xf32>
    %16 = arith.addf %14, %15 : vector<4x1xf32>
    %17 = math.rsqrt %16 : vector<4x1xf32>
    %c0_8 = arith.constant 0 : index
    %18 = memref.load %arg1[%c0_8] : memref<2xf32, #tpu.memory_space<smem>>
    %c1 = arith.constant 1 : index
    %19 = memref.load %arg1[%c1] : memref<2xf32, #tpu.memory_space<smem>>
    %c0_9 = arith.constant 0 : index
    %c0_10 = arith.constant 0 : index
    %20 = vector.load %arg3[%c0_9, %c0_10] : memref<4x1xf32, #tpu.memory_space<vmem>>, vector<4x1xf32>
    %21 = arith.mulf %20, %17 : vector<4x1xf32>
    %22 = vector.broadcast %18 : f32 to vector<4x1xf32>
    %23 = arith.mulf %22, %21 : vector<4x1xf32>
    %24 = vector.broadcast %19 : f32 to vector<4x1xf32>
    %25 = arith.addf %23, %24 : vector<4x1xf32>
    %c0_11 = arith.constant 0 : index
    %c0_12 = arith.constant 0 : index
    %26 = vector.load %arg4[%c0_11, %c0_12] : memref<4x1xf32, #tpu.memory_space<vmem>>, vector<4x1xf32>
    %27 = arith.mulf %5, %21 : vector<4x1xf32>
    %28 = arith.subf %26, %27 : vector<4x1xf32>
    %29 = vector.broadcast %18 : f32 to vector<4x1xf32>
    %30 = arith.mulf %29, %28 : vector<4x1xf32>
    %31 = vector.shape_cast %25 : vector<4x1xf32> to vector<1x4x1xf32>
    %32 = vector.broadcast %31 : vector<1x4x1xf32> to vector<2x4x256xf32>
    %33 = arith.mulf %32, %0 : vector<2x4x256xf32>
    %34 = vector.shape_cast %30 : vector<4x1xf32> to vector<1x4x1xf32>
    %35 = vector.broadcast %34 : vector<1x4x1xf32> to vector<2x4x256xf32>
    %36 = arith.addf %33, %35 : vector<2x4x256xf32>
    %c0_13 = arith.constant 0 : index
    %c0_14 = arith.constant 0 : index
    %c0_15 = arith.constant 0 : index
    %37 = vector.load %arg5[%c0_13, %c0_14, %c0_15] : memref<2x4x256xf32, #tpu.memory_space<vmem>>, vector<2x4x256xf32>
    tpu.vector_store %arg5[%c0_13, %c0_14, %c0_15], %36 {strides = array<i32>} : memref<2x4x256xf32, #tpu.memory_space<vmem>>, vector<2x4x256xf32>,
    return
  }
  func.func @transform_0(%arg0: i32) -> i32 {
    %c0_i32 = arith.constant 0 : i32
    %c0_i32_0 = arith.constant 0 : i32
    return %c0_i32 : i32
  }
  func.func @transform_1(%arg0: i32) -> (i32, i32, i32) {
    %c0_i32 = arith.constant 0 : i32
    %c0_i32_0 = arith.constant 0 : i32
    %c0_i32_1 = arith.constant 0 : i32
    return %c0_i32, %arg0, %c0_i32_0 : i32, i32, i32
  }
  func.func @transform_2(%arg0: i32) -> (i32, i32) {
    %c0_i32 = arith.constant 0 : i32
    %c0_i32_0 = arith.constant 0 : i32
    return %arg0, %c0_i32 : i32, i32
  }
  func.func @transform_3(%arg0: i32) -> (i32, i32) {
    %c0_i32 = arith.constant 0 : i32
    %c0_i32_0 = arith.constant 0 : i32
    return %arg0, %c0_i32 : i32, i32
  }
  func.func @transform_4(%arg0: i32) -> (i32, i32, i32) {
    %c0_i32 = arith.constant 0 : i32
    %c0_i32_0 = arith.constant 0 : i32
    %c0_i32_1 = arith.constant 0 : i32
    return %c0_i32, %arg0, %c0_i32_0 : i32, i32, i32
  }
}

</mosaic_0001>

<llo_original>
// kernel: tpu_custom_call.1
$region0: #{tpu_custom_call.1}
  #allocation0 [shape = 'u32[]', space=smem, size = 0x4, offset = 0x4, fixed_abs, tag = 'smem constant byte address 0x4 - core index']
  #allocation1 [shape = 'u32[72,128]{1,0:T(1,128)}', space=vmem, size = 0x9000, scoped, tag = 'internal scratch']
  %s0 = inlined_call_operand.vmem [shape: f32[2], index: 0, kind: input, shape index: {}]
  %s1 = inlined_call_operand.hbm [shape: f32[2,4,256], index: 1, kind: input, shape index: {}]
  %s2 = inlined_call_operand.vmem [shape: f32[4,1], index: 2, kind: input, shape index: {}]
  %s3 = inlined_call_operand.vmem [shape: f32[4,1], index: 3, kind: input, shape index: {}]
  %s4 = inlined_call_operand.hbm [shape: f32[2,4,256], index: 4, kind: output, shape index: {}]
  %s5 = sld [smem:[#allocation0]]
  $region34: #{tpu_custom_call.1} parent=0
    _
  %s7 = ssub.s32 1, %s5
  %s8 = scalar_select 0, %s7, %s5
  $region1: #{tpu_custom_call.1} parent=0
    #allocation2 [shape = 'u8[512]{0}', space=smem, size = 0x200, scoped, tag = 'input window, operand 0, single buffered']
    #allocation3 [shape = 's32[1]{0}', space=sflag, size = 0x4, scoped, tag = 'scoped memory for tpu_custom_call.1']
    #allocation4 [shape = 's32[1]{0}', space=sflag, size = 0x4, scoped, tag = 'scoped memory for tpu_custom_call.1']
    #allocation5 [shape = 's32[1]{0}', space=sflag, size = 0x4, scoped, tag = 'scoped memory for tpu_custom_call.1']
    #allocation6 [shape = 'u8[8192]{0}', space=vmem, size = 0x2000, scoped, tag = 'input window, operand 1, single buffered']
    #allocation7 [shape = 'u8[8192]{0}', space=vmem, size = 0x2000, scoped, tag = 'output window, operand 0, single buffered']
    %9 = vsyncpa [#allocation5], 0
    %10 = vsyncpa [#allocation3], 0
    %11 = vsyncpa [#allocation4], 0
    // Predicated region
    $region2: #{tpu_custom_call.1} parent=1 // pred_check
      _
    $region3: #{tpu_custom_call.1} parent=1 // pred_check_branch
      %13 = sbr.rel (0) target = $region5
    $region4: #{tpu_custom_call.1} parent=1 // pred_region
      %15 = vsyncadd [#allocation5], 0
      %s17 = sshll.u32 %s0, 4
      %s18 = int_to_ptr.vmem [resolvable:$true] %s17
      %20 = dma.vmem_to_smem %s18, 16, [#allocation2], [#allocation5]
    $region5: #{tpu_custom_call.1} parent=1 // pred_fallthru
      _
    // Predicated region
    $region6: #{tpu_custom_call.1} parent=1 // pred_check
      _
    $region7: #{tpu_custom_call.1} parent=1 // pred_check_branch
      %22 = sbr.rel (0) target = $region9
    $region8: #{tpu_custom_call.1} parent=1 // pred_region
      %24 = vsyncadd [#allocation3], 0
      %s25 = sshll.u32 %s1, 4
      %s26 = int_to_ptr.hbm [resolvable:$true] %s25
      %s27 = sshll.u32 [#allocation6], 4
      %s28 = int_to_ptr.vmem [resolvable:$true] %s27
      %33 = dma.hbm_to_vmem [thread:$0]  %s26, 256, %s28, [#allocation3], 128, 128, 8
    $region9: #{tpu_custom_call.1} parent=1 // pred_fallthru
      _
    // Predicated region
    $region10: #{tpu_custom_call.1} parent=1 // pred_check
      _
    $region11: #{tpu_custom_call.1} parent=1 // pred_check_branch
      %35 = sbr.rel (0) target = $region13
    $region12: #{tpu_custom_call.1} parent=1 // pred_region
      _
    $region13: #{tpu_custom_call.1} parent=1 // pred_fallthru
      _
    // Predicated region
    $region14: #{tpu_custom_call.1} parent=1 // pred_check
      _
    $region15: #{tpu_custom_call.1} parent=1 // pred_check_branch
      %37 = sbr.rel (0) target = $region17
    $region16: #{tpu_custom_call.1} parent=1 // pred_region
      _
    $region17: #{tpu_custom_call.1} parent=1 // pred_fallthru
      _
    // Predicated region
    $region18: #{tpu_custom_call.1} parent=1 // pred_check
      _
    $region19: #{tpu_custom_call.1} parent=1 // pred_check_branch
      %39 = sbr.rel (0) target = $region21
    $region20: #{tpu_custom_call.1} parent=1 // pred_region
      %41 = dma.done [#allocation5], 16
    $region21: #{tpu_custom_call.1} parent=1 // pred_fallthru
      _
    // Predicated region
    $region22: #{tpu_custom_call.1} parent=1 // pred_check
      _
    $region23: #{tpu_custom_call.1} parent=1 // pred_check_branch
      %43 = sbr.rel (0) target = $region25
    $region24: #{tpu_custom_call.1} parent=1 // pred_region
      %45 = dma.done [#allocation3], 256
    $region25: #{tpu_custom_call.1} parent=1 // pred_fallthru
      _
    %46 = sfence
    %v47 = vld [vmem:[#allocation6] sm:$0xff]
    %v48 = vld [vmem:[#allocation6 + $0x8] sm:$0xff]
    %51 = vst [vmem:[#allocation1] ss:$2 sm:$0xff] %v47
    %v52 = vld.sshfl [vmem:[#allocation1] sm:$0xff pattern:$0x75316420]
    %v53 = vld.sshfl [vmem:[#allocation1 + $0x8] sm:$0xff pattern:$0x75316420]
    %s54 = scalar_lea.vmem [#allocation1], 16
    %55 = vst [vmem:[%s54] ss:$2 sm:$0xff] %v48
    %v56 = vld.sshfl [vmem:[#allocation1 + $0x10] sm:$0xff pattern:$0x75316420]
    %v57 = vld.sshfl [vmem:[#allocation1 + $0x18] sm:$0xff pattern:$0x75316420]
    %vm62 = vcmask 1043456
    %v63 = vsel %vm62, %v52, 0.0
    %v64 = vsel %vm62, %v56, 0.0
    %v65 = vadd.f32 %v63, %v64
    %v66 = vsel %vm62, %v53, 0.0
    %v67 = vsel %vm62, %v57, 0.0
    %v68 = vadd.f32 %v66, %v67
    %v69 = vsel %vm62, %v65, 0.0
    %v70 = vsel %vm62, %v68, 0.0
    %v71 = vadd.f32 %v69, %v70
    %72 = vadd.xlane.f32.xlu0 %v71
    %v73 = vpop.xlane.xlu0 %72
    %v74 = vmul.f32 %v73, 0.001953125
    %v77 = vunpack.c.l.s4 839922192
    %v78 = vunpack.c.0.s8 %v77
    %v79 = vperm.slane %v74, %v78
    %v81 = vsub.f32 %v47, %v79
    %v82 = vsub.f32 %v48, %v79
    %v83 = vmul.f32 %v81, %v81
    %v84 = vmul.f32 %v82, %v82
    %87 = vst [vmem:[#allocation1] ss:$2 sm:$0xff] %v83
    %v88 = vld.sshfl [vmem:[#allocation1] sm:$0xff pattern:$0x75316420]
    %v89 = vld.sshfl [vmem:[#allocation1 + $0x8] sm:$0xff pattern:$0x75316420]
    %s90 = scalar_lea.vmem [#allocation1], 16
    %91 = vst [vmem:[%s90] ss:$2 sm:$0xff] %v84
    %v92 = vld.sshfl [vmem:[#allocation1 + $0x10] sm:$0xff pattern:$0x75316420]
    %v93 = vld.sshfl [vmem:[#allocation1 + $0x18] sm:$0xff pattern:$0x75316420]
    %v98 = vsel %vm62, %v88, 0.0
    %v99 = vsel %vm62, %v92, 0.0
    %v100 = vadd.f32 %v98, %v99
    %v101 = vsel %vm62, %v89, 0.0
    %v102 = vsel %vm62, %v93, 0.0
    %v103 = vadd.f32 %v101, %v102
    %v104 = vsel %vm62, %v100, 0.0
    %v105 = vsel %vm62, %v103, 0.0
    %v106 = vadd.f32 %v104, %v105
    %107 = vadd.xlane.f32.xlu0 %v106
    %v108 = vpop.xlane.xlu0 %107
    %v109 = vmul.f32 %v108, 0.001953125
    %v110 = vadd.f32 %v109, 1e-05
    %v111 = vrsqrt.pop %v110
    %v112 = vmul.f32 %v111, %v110
    %v113 = vmul.f32 %v112, %v111
    %v114 = vmul.f32 0.5, %v113
    %v115 = vsub.f32 1.5, %v114
    %v116 = vmul.f32 %v111, %v115
    %vm117 = vweird.f32 %v110
    %vm118 = vweird.f32 %v111
    %vm119 = vmor %vm117, %vm118
    %v120 = vsel %vm119, %v111, %v116
    %s121 = sld [smem:[#allocation2]]
    %s122 = sld [smem:[#allocation2 + $0x1]]
    %v123 = vld [vmem:[%s2] sm:$0xf]
    %v124 = vmul.f32 %v123, %v120
    %v125 = vstv %s121
    %v126 = vmul.f32 %v125, %v124
    %v127 = vstv %s122
    %v128 = vadd.f32 %v126, %v127
    %v129 = vld [vmem:[%s3] sm:$0xf]
    %v130 = vmul.f32 %v74, %v124
    %v131 = vsub.f32 %v129, %v130
    %v132 = vmul.f32 %v125, %v131
    %134 = vset.pattern.permute.xlu0 0
    %135 = vperm.xlu0 %134, %v128
    %v136 = vpop.permute.xlu0 %135
    %138 = vst [vmem:[#allocation1] ss:$2 sm:$0xff] %v47
    %v139 = vld.sshfl [vmem:[#allocation1] sm:$0xff pattern:$0x75316420]
    %v140 = vld.sshfl [vmem:[#allocation1 + $0x8] sm:$0xff pattern:$0x75316420]
    %s141 = scalar_lea.vmem [#allocation1], 16
    %142 = vst [vmem:[%s141] ss:$2 sm:$0xff] %v48
    %v143 = vld.sshfl [vmem:[#allocation1 + $0x10] sm:$0xff pattern:$0x75316420]
    %v144 = vld.sshfl [vmem:[#allocation1 + $0x18] sm:$0xff pattern:$0x75316420]
    %v149 = vmul.f32 %v136, %v139
    %v150 = vmul.f32 %v136, %v140
    %v151 = vmul.f32 %v136, %v143
    %v152 = vmul.f32 %v136, %v144
    %154 = vset.pattern.permute.xlu0 0
    %155 = vperm.xlu0 %154, %v132
    %v156 = vpop.permute.xlu0 %155
    %v158 = vadd.f32 %v149, %v156
    %v159 = vadd.f32 %v150, %v156
    %v160 = vadd.f32 %v151, %v156
    %v161 = vadd.f32 %v152, %v156
    %v166 = vrot.slane %v159, 4
    %v167 = vrot.slane %v161, 4
    %v168 = vsel %vm62, %v158, %v166
    %v169 = vsel %vm62, %v160, %v167
    %172 = vst [vmem:[#allocation7] sm:$0xff] %v168
    %173 = vst [vmem:[#allocation7 + $0x8] sm:$0xff] %v169
    // Predicated region
    $region26: #{tpu_custom_call.1} parent=1 // pred_check
      _
    $region27: #{tpu_custom_call.1} parent=1 // pred_check_branch
      %175 = sbr.rel (0) target = $region29
    $region28: #{tpu_custom_call.1} parent=1 // pred_region
      %177 = vsyncadd [#allocation4], 0
      %s178 = sshll.u32 [#allocation7], 4
      %s179 = int_to_ptr.vmem [resolvable:$true] %s178
      %s180 = sshll.u32 %s4, 4
      %s181 = int_to_ptr.hbm [resolvable:$true] %s180
      %186 = dma.vmem_to_hbm [thread:$0]  %s179, 256, %s181, [#allocation4], 128, 128, 8
    $region29: #{tpu_custom_call.1} parent=1 // pred_fallthru
      _
    // Predicated region
    $region30: #{tpu_custom_call.1} parent=1 // pred_check
      _
    $region31: #{tpu_custom_call.1} parent=1 // pred_check_branch
      %188 = sbr.rel (0) target = $region33
    $region32: #{tpu_custom_call.1} parent=1 // pred_region
      %190 = dma.done [#allocation4], 256
    $region33: #{tpu_custom_call.1} parent=1 // pred_fallthru
      _
    %191 = vsyncpa [#allocation3], 1
    %192 = vsyncpa [#allocation4], 1
    %193 = vsyncpa [#allocation5], 1

</llo_original>
